<compile_context>
chip_gen: v7x
topology: tpu7x:2x2x1
jax: 0.10.0
libtpu: 0.0.40
codegen_flags: <defaults>
</compile_context>

<pallas_src>
import functools
import math

import numpy as np

import jax
import jax.numpy as jnp
from jax.experimental import pallas as pl
from jax.experimental.pallas import tpu as pltpu

_LANES = 128
_TARGET_BLOCK_BYTES = 4 * 1024 * 1024   # ~4 MiB blocks: >=86% HBM roofline regime
_SMALL_INPUT_BYTES = 512 * 1024         # below this, plain XLA add is faster


def _add_pe_kernel(x_ref, pe_ref, o_ref):
    # Dense 2-D tiles; single VPU add, store in x's dtype.
    o_ref[...] = (x_ref[...] + pe_ref[...]).astype(o_ref.dtype)


def _sublane_multiple(itemsize):
    # Packed-tile row multiple: 8 rows (f32), 16 (bf16/f16), 32 (int8/fp8).
    return max(8, 32 // max(1, itemsize))


def _choose_col_tile(batch, d_model):
    """How many batch elements (cb) to fold into one lane-axis block."""
    total = batch * d_model
    if total <= 4 * _LANES:
        # Narrow slab: take the full width (block == full dim, always legal).
        return batch
    step = _LANES // math.gcd(d_model, _LANES)
    if step > batch:
        # Cannot reach 128-lane alignment within `batch`: full width (legal).
        return batch
    cb = step
    # Widen toward >=512 lanes, but only while >=4 column tiles remain so the
    # pe HBM read traffic stays <= ~1/4 (usually <=1/8) of x traffic.
    while (cb * d_model < 4 * _LANES
           and cb + step <= batch
           and total // ((cb + step) * d_model) >= 4):
        cb += step
    return cb


def _choose_row_tile(seq_len, cols, itemsize, sublanes, n_col_tiles, target_blk):
    rows = max(1, target_blk // max(1, cols * itemsize))
    if rows >= seq_len:
        rows = seq_len
    else:
        rows = max(sublanes, (rows // sublanes) * sublanes)
    # Megacore (v7x has 2 TCs): guarantee >=2 grid steps on the parallel axes
    # whenever the seq axis is long enough to split legally.
    if n_col_tiles * pl.cdiv(seq_len, rows) < 2 and seq_len >= 2 * sublanes:
        half = (seq_len + 1) // 2
        rows = max(sublanes, ((half + sublanes - 1) // sublanes) * sublanes)
    return rows


@functools.lru_cache(maxsize=None)
def _vmem_cap_bytes():
    # Generation-aware scoped-VMEM cap: half of physical VMEM (32 MiB on v7x's
    # 64 MiB per-TC, 64 MiB on v5e/v6e's 128 MiB), with a safe fallback.
    try:
        return int(0.5 * pltpu.get_tpu_info().vmem_capacity_bytes)
    except Exception:  # pragma: no cover - info query unavailable
        return 32 * 1024 * 1024


def _add_pe_pallas(x2, pe_in, *, donate_x=False):
    """x2: [seq_len, batch*d_model]; pe_in: [seq_len, cb*d_model] (cb | lane tile)."""
    seq_len, total_cols = x2.shape
    cols = pe_in.shape[1]
    itemsize = np.dtype(x2.dtype).itemsize
    sublanes = _sublane_multiple(itemsize)

    cap = _vmem_cap_bytes()
    target_blk = min(_TARGET_BLOCK_BYTES, max(256 * 1024, cap // 10))

    n_col_tiles = pl.cdiv(total_cols, cols)
    rows = _choose_row_tile(seq_len, cols, itemsize, sublanes, n_col_tiles, target_blk)
    grid = (pl.cdiv(seq_len, rows), n_col_tiles)

    blk_bytes = rows * cols * itemsize
    # x-in + out + pe, each double-buffered, plus headroom; never above cap.
    vmem_limit = int(min(cap, max(8 * 1024 * 1024, 7 * blk_bytes + (2 << 20))))

    extra = {}
    if donate_x:
        # Reuse x's HBM buffer for the output (only truly in-place if the
        # caller donates x at the jit boundary; otherwise XLA inserts a copy).
        extra["input_output_aliases"] = {0: 0}

    return pl.pallas_call(
        _add_pe_kernel,
        out_shape=jax.ShapeDtypeStruct((seq_len, total_cols), x2.dtype),
        grid_spec=pltpu.PrefetchScalarGridSpec(
            num_scalar_prefetch=0,
            grid=grid,
            in_specs=[
                pl.BlockSpec((rows, cols), lambda i, j: (i, j)),  # x tile
                pl.BlockSpec((rows, cols), lambda i, j: (i, 0)),  # pe tile (const in j)
            ],
            out_specs=pl.BlockSpec((rows, cols), lambda i, j: (i, j)),
        ),
        compiler_params=pltpu.CompilerParams(
            dimension_semantics=("parallel", "parallel"),
            vmem_limit_bytes=vmem_limit,
        ),
        **extra,
    )(x2, pe_in)


def make_pe(d_model, param_dim, max_len=500, key=None, dtype=jnp.float32):
    """Concatenated positional-encoding table: (param_dim + max_len, 1, d_model)."""
    if d_model % 2 != 0:
        raise ValueError("d_model must be even (sin/cos interleave)")
    if key is None:
        key = jax.random.PRNGKey(0)
    param_embedding = 0.02 * jax.random.normal(
        key, (param_dim, 1, d_model), dtype=jnp.float32)
    position = jnp.arange(0, max_len, dtype=jnp.float32)[:, None]
    div_term = jnp.exp(
        jnp.arange(0, d_model, 2, dtype=jnp.float32) * (-math.log(10000.0) / d_model))
    angles = position * div_term
    pe = jnp.zeros((max_len, d_model), dtype=jnp.float32)
    pe = pe.at[:, 0::2].set(jnp.sin(angles))
    pe = pe.at[:, 1::2].set(jnp.cos(angles))
    pe = pe[:, None, :]
    return jnp.concatenate([param_embedding, pe], axis=0).astype(dtype)


class TQSPositionalEncoding1D:
    """JAX/Pallas port of the PyTorch module. dropout has p=0 => identity.

    Note: for bf16 x the add is performed in bf16 (x's dtype), whereas PyTorch
    would promote to fp32; this is intentional to keep the kernel mem-bound.
    """

    def __init__(self, d_model, param_dim, max_len=500, dropout=0.0,
                 key=None, dtype=jnp.float32):
        if dropout != 0.0:
            # TODO(synk): dropout p>0 not implemented (module is used with p=0).
            raise NotImplementedError("dropout > 0 is not supported")
        self.d_model = d_model
        self.param_dim = param_dim
        self.max_len = max_len
        self.pe = make_pe(d_model, param_dim, max_len=max_len, key=key, dtype=dtype)
        # (seq_len, batch, dtype name) -> (pe_in replicated slab, cb)
        self._pe_cache = {}

    def _prepare_pe(self, seq_len, batch, dtype):
        """Replicated, dtype-cast pe slab, built once and cached (off hot path)."""
        ck = (int(seq_len), int(batch), np.dtype(dtype).name)
        hit = self._pe_cache.get(ck)
        if hit is not None:
            return hit
        cb = _choose_col_tile(batch, self.d_model)
        pe2 = self.pe.reshape(-1, self.d_model)[:seq_len].astype(dtype)
        pe_in = jnp.tile(pe2, (1, cb)) if cb > 1 else pe2
        self._pe_cache[ck] = (pe_in, cb)
        return pe_in, cb

    def __call__(self, x, system_size=None, *, donate_x=False, force_pallas=False):
        """x: [seq_len, batch, d_model] -> x + pe[:seq_len] (broadcast over batch)."""
        seq_len, batch, d_model = x.shape
        if d_model != self.d_model:
            raise ValueError("d_model mismatch between x and the positional table")
        if seq_len > self.pe.shape[0]:
            raise ValueError(
                f"seq_len={seq_len} exceeds positional table length {self.pe.shape[0]}")

        itemsize = np.dtype(x.dtype).itemsize
        if (not force_pallas
                and seq_len * batch * d_model * itemsize < _SMALL_INPUT_BYTES):
            # Tiny slab: a single-block pallas_call pays fixed launch/DMA-setup
            # overhead that dominates; let XLA fuse the broadcast add instead.
            return x + self.pe[:seq_len].astype(x.dtype)

        pe_in, _cb = self._prepare_pe(seq_len, batch, x.dtype)
        x2 = x.reshape(seq_len, batch * d_model)
        out2 = _add_pe_pallas(x2, pe_in, donate_x=donate_x)
        return out2.reshape(seq_len, batch, d_model)


if __name__ == "__main__":
    key = jax.random.PRNGKey(0)
    k_pe, k_x1, k_x2 = jax.random.split(key, 3)

    # --- Small shape consistent with the module: x [seq, batch, d_model]. ---
    d_model = 32
    param_dim = 4
    max_len = 16
    seq_len = 8       # <= param_dim + max_len
    batch = 2

    enc = TQSPositionalEncoding1D(d_model, param_dim, max_len=max_len, key=k_pe)
    x = jax.random.normal(k_x1, (seq_len, batch, d_model), dtype=jnp.float32)

    out = enc(x, force_pallas=True)          # exercise the Pallas path
    out = jax.block_until_ready(out)

    ref = x + enc.pe[:seq_len]               # pure-JAX reference (dropout p=0)
    assert out.shape == (seq_len, batch, d_model)
    assert jnp.allclose(out, ref, atol=1e-6), "mismatch vs reference (small case)"

    # --- Slightly larger case: exercises 128-aligned column tiling + pe reuse,
    #     including a batch that is not a multiple of the chosen cb. ---
    d2, p2, L2, s2, b2 = 128, 4, 96, 64, 10
    enc2 = TQSPositionalEncoding1D(d2, p2, max_len=L2, key=k_pe)
    x2 = jax.random.normal(k_x2, (s2, b2, d2), dtype=jnp.float32)
    out2 = jax.block_until_ready(enc2(x2, force_pallas=True))
    ref2 = x2 + enc2.pe[:s2]
    assert jnp.allclose(out2, ref2, atol=1e-6), "mismatch vs reference (tiled case)"

    print("KERNEL_OK")
</pallas_src>

<mosaic_0001>
module attributes {stable_mosaic.version = 11 : i64} {
  func.func @_add_pe_kernel(%arg0: i32, %arg1: i32, %arg2: memref<8x64xf32, #tpu.memory_space<vmem>>, %arg3: memref<8x64xf32, #tpu.memory_space<vmem>>, %arg4: memref<8x64xf32, #tpu.memory_space<vmem>>) attributes {dimension_semantics = [#tpu.dimension_semantics<parallel>, #tpu.dimension_semantics<parallel>], iteration_bounds = array<i64: 1, 1>, scalar_prefetch = 0 : i64, scratch_operands = 0 : i64, tpu.core_type = #tpu.core_type<tc>, window_params = [{transform_indices = @transform_0, window_bounds = array<i64: 8, 64>}, {transform_indices = @transform_1, window_bounds = array<i64: 8, 64>}, {transform_indices = @transform_2, window_bounds = array<i64: 8, 64>}]} {
    %c0 = arith.constant 0 : index
    %c0_0 = arith.constant 0 : index
    %0 = vector.load %arg2[%c0, %c0_0] : memref<8x64xf32, #tpu.memory_space<vmem>>, vector<8x64xf32>
    %c0_1 = arith.constant 0 : index
    %c0_2 = arith.constant 0 : index
    %1 = vector.load %arg3[%c0_1, %c0_2] : memref<8x64xf32, #tpu.memory_space<vmem>>, vector<8x64xf32>
    %2 = arith.addf %0, %1 : vector<8x64xf32>
    %c0_3 = arith.constant 0 : index
    %c0_4 = arith.constant 0 : index
    %3 = vector.load %arg4[%c0_3, %c0_4] : memref<8x64xf32, #tpu.memory_space<vmem>>, vector<8x64xf32>
    tpu.vector_store %arg4[%c0_3, %c0_4], %2 {strides = array<i32>} : memref<8x64xf32, #tpu.memory_space<vmem>>, vector<8x64xf32>,
    return
  }
  func.func @transform_0(%arg0: i32, %arg1: i32) -> (i32, i32) {
    %c0_i32 = arith.constant 0 : i32
    return %arg0, %arg1 : i32, i32
  }
  func.func @transform_1(%arg0: i32, %arg1: i32) -> (i32, i32) {
    %c0_i32 = arith.constant 0 : i32
    %c0_i32_0 = arith.constant 0 : i32
    return %arg0, %c0_i32 : i32, i32
  }
  func.func @transform_2(%arg0: i32, %arg1: i32) -> (i32, i32) {
    %c0_i32 = arith.constant 0 : i32
    return %arg0, %arg1 : i32, i32
  }
}

</mosaic_0001>

<llo_original>
// kernel: tpu_custom_call.1
$region0: #{tpu_custom_call.1}
  #allocation0 [shape = 'u32[]', space=smem, size = 0x4, offset = 0x4, fixed_abs, tag = 'smem constant byte address 0x4 - core index']
  #allocation1 [shape = 'u32[144,128]{1,0:T(1,128)}', space=vmem, size = 0x12000, scoped, tag = 'internal scratch']
  %s0 = inlined_call_operand.hbm [shape: f32[8,64], index: 0, kind: input, shape index: {}]
  %s1 = inlined_call_operand.hbm [shape: f32[8,64], index: 1, kind: input, shape index: {}]
  %s2 = inlined_call_operand.hbm [shape: f32[8,64], index: 2, kind: output, shape index: {}]
  %s3 = sld [smem:[#allocation0]]
  $region26: #{tpu_custom_call.1} parent=0
    _
  %s5 = ssub.s32 1, %s3
  %s6 = scalar_select 0, %s5, %s3
  $region1: #{tpu_custom_call.1} parent=0
    #allocation2 [shape = 'u8[4096]{0}', space=vmem, size = 0x1000, scoped, tag = 'input window, operand 0, single buffered']
    #allocation3 [shape = 's32[1]{0}', space=sflag, size = 0x4, scoped, tag = 'scoped memory for tpu_custom_call.1']
    #allocation4 [shape = 's32[1]{0}', space=sflag, size = 0x4, scoped, tag = 'scoped memory for tpu_custom_call.1']
    #allocation5 [shape = 'u8[4096]{0}', space=vmem, size = 0x1000, scoped, tag = 'input window, operand 1, single buffered']
    #allocation6 [shape = 's32[1]{0}', space=sflag, size = 0x4, scoped, tag = 'scoped memory for tpu_custom_call.1']
    #allocation7 [shape = 'u8[4096]{0}', space=vmem, size = 0x1000, scoped, tag = 'output window, operand 0, single buffered']
    %7 = vsyncpa [#allocation3], 0
    %8 = vsyncpa [#allocation6], 0
    %9 = vsyncpa [#allocation4], 0
    // Predicated region
    $region2: #{tpu_custom_call.1} parent=1 // pred_check
      _
    $region3: #{tpu_custom_call.1} parent=1 // pred_check_branch
      %11 = sbr.rel (0) target = $region5
    $region4: #{tpu_custom_call.1} parent=1 // pred_region
      %s13 = ssub.s32 128, 128
      %14 = vsyncadd [#allocation3], %s13
      %s16 = sshll.u32 [#allocation2], 4
      %s17 = int_to_ptr.vmem [resolvable:$true] %s16
      %19 = dma.hbm_to_vmem [thread:$0]  %s0, 128, %s17, [#allocation3]
    $region5: #{tpu_custom_call.1} parent=1 // pred_fallthru
      _
    // Predicated region
    $region6: #{tpu_custom_call.1} parent=1 // pred_check
      _
    $region7: #{tpu_custom_call.1} parent=1 // pred_check_branch
      %21 = sbr.rel (0) target = $region9
    $region8: #{tpu_custom_call.1} parent=1 // pred_region
      %s23 = ssub.s32 128, 128
      %24 = vsyncadd [#allocation6], %s23
      %s26 = sshll.u32 [#allocation5], 4
      %s27 = int_to_ptr.vmem [resolvable:$true] %s26
      %29 = dma.hbm_to_vmem [thread:$0]  %s1, 128, %s27, [#allocation6]
    $region9: #{tpu_custom_call.1} parent=1 // pred_fallthru
      _
    // Predicated region
    $region10: #{tpu_custom_call.1} parent=1 // pred_check
      _
    $region11: #{tpu_custom_call.1} parent=1 // pred_check_branch
      %31 = sbr.rel (0) target = $region13
    $region12: #{tpu_custom_call.1} parent=1 // pred_region
      %32 = dma.done [#allocation3], 128
    $region13: #{tpu_custom_call.1} parent=1 // pred_fallthru
      _
    // Predicated region
    $region14: #{tpu_custom_call.1} parent=1 // pred_check
      _
    $region15: #{tpu_custom_call.1} parent=1 // pred_check_branch
      %34 = sbr.rel (0) target = $region17
    $region16: #{tpu_custom_call.1} parent=1 // pred_region
      %35 = dma.done [#allocation6], 128
    $region17: #{tpu_custom_call.1} parent=1 // pred_fallthru
      _
    %v36 = vld [vmem:[#allocation2] sm:$0xff]
    %v37 = vld [vmem:[#allocation5] sm:$0xff]
    %v38 = vadd.f32 %v36, %v37
    %vm39 = vcmask 523264
    %40 = vst.msk [vmem:[#allocation7] sm:$0xff] %vm39, %v38
    // Predicated region
    $region18: #{tpu_custom_call.1} parent=1 // pred_check
      _
    $region19: #{tpu_custom_call.1} parent=1 // pred_check_branch
      %42 = sbr.rel (0) target = $region21
    $region20: #{tpu_custom_call.1} parent=1 // pred_region
      %s44 = ssub.s32 128, 128
      %45 = vsyncadd [#allocation4], %s44
      %s47 = sshll.u32 [#allocation7], 4
      %s48 = int_to_ptr.vmem [resolvable:$true] %s47
      %50 = dma.vmem_to_hbm [thread:$0]  %s48, 128, %s2, [#allocation4]
    $region21: #{tpu_custom_call.1} parent=1 // pred_fallthru
      _
    // Predicated region
    $region22: #{tpu_custom_call.1} parent=1 // pred_check
      _
    $region23: #{tpu_custom_call.1} parent=1 // pred_check_branch
      %52 = sbr.rel (0) target = $region25
    $region24: #{tpu_custom_call.1} parent=1 // pred_region
      %53 = dma.done [#allocation4], 128
    $region25: #{tpu_custom_call.1} parent=1 // pred_fallthru
      _
    %54 = vsyncpa [#allocation3], 1
    %55 = vsyncpa [#allocation6], 1
    %56 = vsyncpa [#allocation4], 1

</llo_original>
